<compile_context>
chip_gen: v5e
topology: v5e:2x2
jax: 0.10.0
libtpu: 0.0.40
codegen_flags: <defaults>
</compile_context>

<pallas_src>
import functools

import jax
import jax.numpy as jnp
from jax import lax
from jax.experimental import pallas as pl
from jax.experimental.pallas import tpu as pltpu


def _round_up(x, m):
    return ((x + m - 1) // m) * m


def _vmem_capacity_bytes(default=64 * 1024 * 1024):
    try:
        info = pltpu.get_tpu_info()
        return int(getattr(info, "vmem_capacity_bytes", default))
    except Exception:
        return default


# ---------------------------------------------------------------------------
# Kernel 1: context matmul + bias + ReLU, per-batch BN sum / sum-of-squares
#           accumulated in revisited (1, 1, n_pad) output blocks.
# ---------------------------------------------------------------------------
def _linear_relu_stats_kernel(x_ref, w_ref, b_ref,            # inputs
                              y_ref, sum_ref, sumsq_ref,      # outputs
                              *, tl, context_size, dilation, valid_rows, fuse):
    l = pl.program_id(1)
    nl = pl.num_programs(1)

    # Per-batch stats accumulate directly in the revisited output block (its
    # index depends only on the batch axis), so no shared scratch is needed
    # and the batch axis can be megacore-parallel.
    @pl.when(l == 0)
    def _():
        sum_ref[...] = jnp.zeros_like(sum_ref)
        sumsq_ref[...] = jnp.zeros_like(sumsq_ref)

    base = pl.multiple_of(l * tl, 8)          # tl is a multiple of 8

    if fuse:
        # One matmul with K = context_size * D_pad: fills the MXU K dimension
        # when D is small and removes the C-1 accumulator passes.
        parts = [x_ref[0, pl.ds(base + c * dilation, tl), :]
                 for c in range(context_size)]
        xw = parts[0] if context_size == 1 else jnp.concatenate(parts, axis=-1)
        acc = jnp.dot(xw, w_ref[...], preferred_element_type=jnp.float32)
    else:
        n_out = b_ref.shape[-1]
        acc = jnp.zeros((tl, n_out), jnp.float32)
        for c in range(context_size):         # static unroll, context is small
            xc = x_ref[0, pl.ds(base + c * dilation, tl), :]
            acc += jnp.dot(xc, w_ref[c], preferred_element_type=jnp.float32)

    y = jnp.maximum(acc + b_ref[...], 0.0)     # bias + ReLU in f32
    y_ref[0] = y.astype(y_ref.dtype)

    # BN batch statistics.  Only the last row tile of a batch can contain
    # zero-padded tail rows, so the mask is applied only there.
    @pl.when(l < nl - 1)
    def _():
        sum_ref[0] += jnp.sum(y, axis=0, keepdims=True)
        sumsq_ref[0] += jnp.sum(y * y, axis=0, keepdims=True)

    @pl.when(l == nl - 1)
    def _():
        rows = base + lax.broadcasted_iota(jnp.int32, (tl, 1), 0)
        ym = jnp.where(rows < valid_rows, y, 0.0)
        sum_ref[0] += jnp.sum(ym, axis=0, keepdims=True)
        sumsq_ref[0] += jnp.sum(ym * ym, axis=0, keepdims=True)


# ---------------------------------------------------------------------------
# Kernel 2: BN folded into one per-channel scale/shift; writes the UNPADDED
#           (B, L, N) output directly (trailing partial row block is masked).
# ---------------------------------------------------------------------------
def _scale_shift_kernel(y_ref, scale_ref, shift_ref, o_ref):
    n = o_ref.shape[-1]
    y = y_ref[0, :, :n].astype(jnp.float32)
    o_ref[0] = (y * scale_ref[...] + shift_ref[...]).astype(o_ref.dtype)


# ---------------------------------------------------------------------------
# Wrapper
# ---------------------------------------------------------------------------
def tdnn_forward(x, weight, bias, gamma, beta, *, context_size, dilation,
                 batch_norm=True, eps=1e-5, row_tile=256,
                 compute_dtype=jnp.bfloat16, fuse_context=None):
    """x: (B, T, D). weight: (N, D*context_size). bias/gamma/beta: (N,).
    Returns (B, L, N) with L = T - (context_size - 1) * dilation."""
    B, T, D = x.shape
    N = weight.shape[0]
    assert weight.shape[1] == D * context_size
    L = T - (context_size - 1) * dilation
    assert L > 0
    out_dtype = x.dtype
    itemsize = jnp.dtype(compute_dtype).itemsize

    if fuse_context is None:
        # Fuse the context gather into a single K = C*D_pad matmul when a
        # single context slice would under-fill the MXU K dimension.
        fuse_context = context_size > 1 and D < 256

    # Lane-dense padded channel dim (multiple of 128); removed by kernel 2.
    n_pad = _round_up(N, 128)
    # Row tiling: multiple of 8, capped so the f32 accumulator stays near the
    # vreg file size; tail handled by zero padding + last-tile stats masking.
    tl_cap = max(64, min(256, ((256 * 1024) // (n_pad * 4)) // 8 * 8))
    tl = max(8, min(_round_up(row_tile, 8), tl_cap, _round_up(L, 8)))
    l_pad = _round_up(L, tl)
    n_l_tiles = l_pad // tl
    t_pad = l_pad + (context_size - 1) * dilation

    # --- glue: pad / reshape (no unfolded window matrix is ever built) ------
    if fuse_context:
        d_pad = _round_up(D, 128)
        x_p = jnp.pad(x, ((0, 0), (0, t_pad - T), (0, d_pad - D)))
        # nn.Linear weight columns follow F.unfold ordering: context-major,
        # feature-minor -> (N, C, D) -> pad -> (C*d_pad, n_pad).
        w = weight.reshape(N, context_size, D)
        w = jnp.pad(w, ((0, n_pad - N), (0, 0), (0, d_pad - D)))
        w = w.transpose(1, 2, 0).reshape(context_size * d_pad, n_pad)
        w_spec = pl.BlockSpec((context_size * d_pad, n_pad), lambda b, l: (0, 0))
        k_dim = context_size * d_pad
    else:
        d_pad = D
        x_p = jnp.pad(x, ((0, 0), (0, t_pad - T), (0, 0)))
        w = weight.reshape(N, context_size, D).transpose(1, 2, 0)  # (C, D, N)
        w = jnp.pad(w, ((0, 0), (0, 0), (0, n_pad - N)))
        w_spec = pl.BlockSpec((context_size, D, n_pad), lambda b, l: (0, 0, 0))
        k_dim = context_size * D
    x_p = x_p.astype(compute_dtype)
    w = w.astype(compute_dtype)
    b2 = jnp.pad(bias, (0, n_pad - N)).reshape(1, n_pad).astype(jnp.float32)

    grid = (B, n_l_tiles)
    flops = 2 * B * l_pad * k_dim * n_pad
    bytes_accessed = int(x_p.size * itemsize + w.size * itemsize + b2.size * 4
                         + B * l_pad * n_pad * itemsize + 2 * B * n_pad * 4)

    # VMEM budget: double-buffered operands + output tiles + f32 temporaries.
    vmem_need = 2 * (t_pad * d_pad * itemsize          # per-batch x slab
                     + w.size * itemsize               # weights
                     + n_pad * 4                       # bias
                     + tl * n_pad * itemsize           # y tile
                     + 2 * n_pad * 4)                  # per-batch stats blocks
    vmem_need += 6 * tl * n_pad * 4                    # acc / ReLU / stat temps
    vmem_limit = int(min(_vmem_capacity_bytes(),
                         max(2 * vmem_need, 32 * 1024 * 1024)))

    kernel1 = functools.partial(
        _linear_relu_stats_kernel, tl=tl, context_size=context_size,
        dilation=dilation, valid_rows=L, fuse=fuse_context)

    y, b_sum, b_sumsq = pl.pallas_call(
        kernel1,
        out_shape=(
            jax.ShapeDtypeStruct((B, l_pad, n_pad), compute_dtype),
            jax.ShapeDtypeStruct((B, 1, n_pad), jnp.float32),
            jax.ShapeDtypeStruct((B, 1, n_pad), jnp.float32),
        ),
        grid=grid,
        in_specs=[
            # Full per-batch x slab: stays resident in VMEM across all l tiles.
            pl.BlockSpec((1, t_pad, d_pad), lambda b, l: (b, 0, 0)),
            w_spec,
            pl.BlockSpec((1, n_pad), lambda b, l: (0, 0)),
        ],
        out_specs=(
            pl.BlockSpec((1, tl, n_pad), lambda b, l: (b, l, 0)),
            pl.BlockSpec((1, 1, n_pad), lambda b, l: (b, 0, 0)),
            pl.BlockSpec((1, 1, n_pad), lambda b, l: (b, 0, 0)),
        ),
        compiler_params=pltpu.CompilerParams(
            dimension_semantics=("parallel", "arbitrary"),
            vmem_limit_bytes=vmem_limit),
        cost_estimate=pl.CostEstimate(flops=flops, transcendentals=0,
                                      bytes_accessed=bytes_accessed),
    )(x_p, w, b2)

    # Fold BN batch stats + affine into one per-channel scale/shift (glue on
    # (N,)-sized vectors only; the heavy elementwise pass stays in Pallas).
    if batch_norm:
        count = float(B * L)
        ch_sum = jnp.sum(b_sum[:, 0, :N], axis=0)
        ch_sumsq = jnp.sum(b_sumsq[:, 0, :N], axis=0)
        mean = ch_sum / count
        # Biased variance (PyTorch BN forward); guard E[x^2]-mean^2 cancel.
        var = jnp.maximum(ch_sumsq / count - mean * mean, 0.0)
        inv_std = lax.rsqrt(var + eps)
        g = gamma.astype(jnp.float32) * inv_std
        scale = g.reshape(1, N)
        shift = (beta.astype(jnp.float32) - mean * g).reshape(1, N)
    else:
        scale = jnp.ones((1, N), jnp.float32)
        shift = jnp.zeros((1, N), jnp.float32)

    # Epilogue row tile: a multiple of tl that divides l_pad (keeps the y reads
    # in bounds) and keeps the double-buffered blocks a few MiB (HBM-bound).
    bytes_per_row = n_pad * itemsize + N * jnp.dtype(out_dtype).itemsize
    k_mult = 1
    for cand in range(1, n_l_tiles + 1):
        if (n_l_tiles % cand == 0 and cand * tl <= 2048
                and cand * tl * bytes_per_row <= 4 * 1024 * 1024):
            k_mult = cand
    tl2 = k_mult * tl
    n_l2 = pl.cdiv(L, tl2)

    out = pl.pallas_call(
        _scale_shift_kernel,
        out_shape=jax.ShapeDtypeStruct((B, L, N), out_dtype),
        grid=(B, n_l2),
        in_specs=[
            pl.BlockSpec((1, tl2, n_pad), lambda b, l: (b, l, 0)),
            pl.BlockSpec((1, N), lambda b, l: (0, 0)),
            pl.BlockSpec((1, N), lambda b, l: (0, 0)),
        ],
        out_specs=pl.BlockSpec((1, tl2, N), lambda b, l: (b, l, 0)),
        compiler_params=pltpu.CompilerParams(
            dimension_semantics=("parallel", "parallel"),
            vmem_limit_bytes=vmem_limit),
        cost_estimate=pl.CostEstimate(
            flops=2 * B * L * N, transcendentals=0,
            bytes_accessed=int(B * l_pad * n_pad * itemsize
                               + B * L * N * jnp.dtype(out_dtype).itemsize
                               + 2 * N * 4)),
    )(y, scale, shift)
    return out


# ---------------------------------------------------------------------------
# Pure-JAX reference (mirrors the PyTorch forward, BN in training mode)
# ---------------------------------------------------------------------------
def tdnn_reference(x, weight, bias, gamma, beta, *, context_size, dilation,
                   batch_norm=True, eps=1e-5):
    B, T, D = x.shape
    L = T - (context_size - 1) * dilation
    windows = jnp.concatenate(
        [x[:, c * dilation:c * dilation + L, :] for c in range(context_size)],
        axis=-1)
    y = jnp.maximum(jnp.einsum("blk,nk->bln", windows, weight) + bias, 0.0)
    if not batch_norm:
        return y
    flat = y.reshape(-1, y.shape[-1])
    mean = flat.mean(axis=0)
    var = flat.var(axis=0)                 # biased, like PyTorch BN forward
    return (y - mean) * lax.rsqrt(var + eps) * gamma + beta


if __name__ == "__main__":
    key = jax.random.PRNGKey(0)

    def make_params(k, D, N, C):
        kx, kw, kb, kg, kbe = jax.random.split(k, 5)
        K = D * C
        bound = 1.0 / (K ** 0.5)
        weight = jax.random.uniform(kw, (N, K), jnp.float32, -bound, bound)
        bias = jax.random.uniform(kb, (N,), jnp.float32, -bound, bound)
        gamma = 1.0 + 0.1 * jax.random.normal(kg, (N,), jnp.float32)
        beta = 0.1 * jax.random.normal(kbe, (N,), jnp.float32)
        return kx, weight, bias, gamma, beta

    # Config A: context 5, dilation 1 ([-2,-1,0,1,2]); L=18 exercises the
    # padded-tail masking of the BN statistics.
    B, T, D, N, C, dil = 2, 22, 64, 128, 5, 1
    k1, k2 = jax.random.split(key)
    kx, weight, bias, gamma, beta = make_params(k1, D, N, C)
    x = jax.random.normal(kx, (B, T, D), dtype=jnp.float32)
    L = T - (C - 1) * dil
    ref = tdnn_reference(x, weight, bias, gamma, beta,
                         context_size=C, dilation=dil)

    # 1) f32, fused-K path, small row tile -> multi-tile grid + stats accum.
    out = tdnn_forward(x, weight, bias, gamma, beta, context_size=C,
                       dilation=dil, row_tile=8, compute_dtype=jnp.float32)
    out = jax.block_until_ready(out)
    assert out.shape == (B, L, N), out.shape
    assert jnp.allclose(out, ref, atol=2e-3, rtol=2e-3), (
        float(jnp.max(jnp.abs(out - ref))))

    # 2) f32, accumulating (non-fused) path.
    out = tdnn_forward(x, weight, bias, gamma, beta, context_size=C,
                       dilation=dil, compute_dtype=jnp.float32,
                       fuse_context=False)
    out = jax.block_until_ready(out)
    assert jnp.allclose(out, ref, atol=2e-3, rtol=2e-3), (
        float(jnp.max(jnp.abs(out - ref))))

    # 3) default bf16 matmul path (fused-K).
    out = tdnn_forward(x, weight, bias, gamma, beta,
                       context_size=C, dilation=dil)
    out = jax.block_until_ready(out)
    assert out.shape == (B, L, N), out.shape
    assert jnp.allclose(out, ref, atol=1e-1, rtol=1e-1), (
        float(jnp.max(jnp.abs(out - ref))))

    # 4) context 3, dilation 2 ([-2, 0, 2]).
    B2, T2, D2, N2, C2, dil2 = 2, 20, 64, 128, 3, 2
    kx2, weight2, bias2, gamma2, beta2 = make_params(k2, D2, N2, C2)
    x2 = jax.random.normal(kx2, (B2, T2, D2), dtype=jnp.float32)
    L2 = T2 - (C2 - 1) * dil2
    ref2 = tdnn_reference(x2, weight2, bias2, gamma2, beta2,
                          context_size=C2, dilation=dil2)
    out2 = tdnn_forward(x2, weight2, bias2, gamma2, beta2, context_size=C2,
                        dilation=dil2, compute_dtype=jnp.float32)
    out2 = jax.block_until_ready(out2)
    assert out2.shape == (B2, L2, N2), out2.shape
    assert jnp.allclose(out2, ref2, atol=2e-3, rtol=2e-3), (
        float(jnp.max(jnp.abs(out2 - ref2))))

    print("KERNEL_OK")
</pallas_src>

<mosaic_0001>
module attributes {stable_mosaic.version = 11 : i64} {
  func.func @_linear_relu_stats_kernel(%arg0: i32, %arg1: i32, %arg2: memref<1x28x128xf32, #tpu.memory_space<vmem>>, %arg3: memref<640x128xf32, #tpu.memory_space<vmem>>, %arg4: memref<1x128xf32, #tpu.memory_space<vmem>>, %arg5: memref<1x8x128xf32, #tpu.memory_space<vmem>>, %arg6: memref<1x1x128xf32, #tpu.memory_space<vmem>>, %arg7: memref<1x1x128xf32, #tpu.memory_space<vmem>>) attributes {dimension_semantics = [#tpu.dimension_semantics<parallel>, #tpu.dimension_semantics<arbitrary>], iteration_bounds = array<i64: 2, 3>, scalar_prefetch = 0 : i64, scratch_operands = 0 : i64, tpu.core_type = #tpu.core_type<tc>, window_params = [{transform_indices = @transform_0, window_bounds = array<i64: 1, 28, 128>}, {pipeline_mode = #tpu.pipeline_mode<synchronous>, transform_indices = @transform_1, window_bounds = array<i64: 640, 128>}, {pipeline_mode = #tpu.pipeline_mode<synchronous>, transform_indices = @transform_2, window_bounds = array<i64: 1, 128>}, {transform_indices = @transform_3, window_bounds = array<i64: 1, 8, 128>}, {transform_indices = @transform_4, window_bounds = array<i64: 1, 1, 128>}, {transform_indices = @transform_5, window_bounds = array<i64: 1, 1, 128>}]} {
    %c0_i32 = arith.constant 0 : i32
    %0 = arith.cmpi eq, %arg1, %c0_i32 : i32
    %1 = arith.extui %0 : i1 to i32
    %c0_i32_0 = arith.constant 0 : i32
    %2 = arith.cmpi ne, %1, %c0_i32_0 : i32
    scf.if %2 {
      %cst_23 = arith.constant 0.000000e+00 : f32
      %42 = vector.broadcast %cst_23 : f32 to vector<1x1x128xf32>
      %c0_24 = arith.constant 0 : index
      %c0_25 = arith.constant 0 : index
      %c0_26 = arith.constant 0 : index
      %43 = vector.load %arg6[%c0_24, %c0_25, %c0_26] : memref<1x1x128xf32, #tpu.memory_space<vmem>>, vector<1x1x128xf32>
      tpu.vector_store %arg6[%c0_24, %c0_25, %c0_26], %42 {strides = array<i32>} : memref<1x1x128xf32, #tpu.memory_space<vmem>>, vector<1x1x128xf32>,
      %cst_27 = arith.constant 0.000000e+00 : f32
      %44 = vector.broadcast %cst_27 : f32 to vector<1x1x128xf32>
      %c0_28 = arith.constant 0 : index
      %c0_29 = arith.constant 0 : index
      %c0_30 = arith.constant 0 : index
      %45 = vector.load %arg7[%c0_28, %c0_29, %c0_30] : memref<1x1x128xf32, #tpu.memory_space<vmem>>, vector<1x1x128xf32>
      tpu.vector_store %arg7[%c0_28, %c0_29, %c0_30], %44 {strides = array<i32>} : memref<1x1x128xf32, #tpu.memory_space<vmem>>, vector<1x1x128xf32>,
    } else {
    }
    %c8_i32 = arith.constant 8 : i32
    %3 = arith.muli %arg1, %c8_i32 : i32
    %4 = tpu.assume_multiple %3, 8 : i32
    %c0_i32_1 = arith.constant 0 : i32
    %5 = arith.addi %4, %c0_i32_1 : i32
    %c0 = arith.constant 0 : index
    %6 = arith.index_cast %5 : i32 to index
    %c0_2 = arith.constant 0 : index
    %7 = vector.load %arg2[%c0, %6, %c0_2] : memref<1x28x128xf32, #tpu.memory_space<vmem>>, vector<1x8x128xf32>
    %8 = vector.shape_cast %7 : vector<1x8x128xf32> to vector<8x128xf32>
    %c1_i32 = arith.constant 1 : i32
    %9 = arith.addi %4, %c1_i32 : i32
    %c0_3 = arith.constant 0 : index
    %10 = arith.index_cast %9 : i32 to index
    %c0_4 = arith.constant 0 : index
    %11 = vector.load %arg2[%c0_3, %10, %c0_4] : memref<1x28x128xf32, #tpu.memory_space<vmem>>, vector<1x8x128xf32>
    %12 = vector.shape_cast %11 : vector<1x8x128xf32> to vector<8x128xf32>
    %c2_i32 = arith.constant 2 : i32
    %13 = arith.addi %4, %c2_i32 : i32
    %c0_5 = arith.constant 0 : index
    %14 = arith.index_cast %13 : i32 to index
    %c0_6 = arith.constant 0 : index
    %15 = vector.load %arg2[%c0_5, %14, %c0_6] : memref<1x28x128xf32, #tpu.memory_space<vmem>>, vector<1x8x128xf32>
    %16 = vector.shape_cast %15 : vector<1x8x128xf32> to vector<8x128xf32>
    %c3_i32 = arith.constant 3 : i32
    %17 = arith.addi %4, %c3_i32 : i32
    %c0_7 = arith.constant 0 : index
    %18 = arith.index_cast %17 : i32 to index
    %c0_8 = arith.constant 0 : index
    %19 = vector.load %arg2[%c0_7, %18, %c0_8] : memref<1x28x128xf32, #tpu.memory_space<vmem>>, vector<1x8x128xf32>
    %20 = vector.shape_cast %19 : vector<1x8x128xf32> to vector<8x128xf32>
    %c4_i32 = arith.constant 4 : i32
    %21 = arith.addi %4, %c4_i32 : i32
    %c0_9 = arith.constant 0 : index
    %22 = arith.index_cast %21 : i32 to index
    %c0_10 = arith.constant 0 : index
    %23 = vector.load %arg2[%c0_9, %22, %c0_10] : memref<1x28x128xf32, #tpu.memory_space<vmem>>, vector<1x8x128xf32>
    %24 = vector.shape_cast %23 : vector<1x8x128xf32> to vector<8x128xf32>
    %25 = tpu.concatenate %8, %12, %16, %20, %24 in 1 : vector<8x128xf32>, vector<8x128xf32>, vector<8x128xf32>, vector<8x128xf32>, vector<8x128xf32> -> vector<8x640xf32>
    %c0_11 = arith.constant 0 : index
    %c0_12 = arith.constant 0 : index
    %26 = vector.load %arg3[%c0_11, %c0_12] : memref<640x128xf32, #tpu.memory_space<vmem>>, vector<640x128xf32>
    %cst = arith.constant dense<0.000000e+00> : vector<8x128xf32>
    %27 = tpu.matmul %25, %26, %cst {dimension_numbers = #tpu.dot_dimension_numbers<[1], [0], [0], [1], [0, 0, 1, 1], [], []>} : vector<8x640xf32>, vector<640x128xf32>, vector<8x128xf32> -> vector<8x128xf32>
    %c0_13 = arith.constant 0 : index
    %c0_14 = arith.constant 0 : index
    %28 = vector.load %arg4[%c0_13, %c0_14] : memref<1x128xf32, #tpu.memory_space<vmem>>, vector<1x128xf32>
    %29 = vector.broadcast %28 : vector<1x128xf32> to vector<8x128xf32>
    %30 = arith.addf %27, %29 : vector<8x128xf32>
    %cst_15 = arith.constant 0.000000e+00 : f32
    %31 = vector.broadcast %cst_15 : f32 to vector<8x128xf32>
    %32 = arith.maximumf %30, %31 : vector<8x128xf32>
    %c0_16 = arith.constant 0 : index
    %c0_17 = arith.constant 0 : index
    %c0_18 = arith.constant 0 : index
    %33 = vector.load %arg5[%c0_16, %c0_17, %c0_18] : memref<1x8x128xf32, #tpu.memory_space<vmem>>, vector<1x8x128xf32>
    %34 = vector.shape_cast %33 : vector<1x8x128xf32> to vector<8x128xf32>
    %35 = vector.shape_cast %32 : vector<8x128xf32> to vector<1x8x128xf32>
    tpu.vector_store %arg5[%c0_16, %c0_17, %c0_18], %35 {strides = array<i32>} : memref<1x8x128xf32, #tpu.memory_space<vmem>>, vector<1x8x128xf32>,
    %c2_i32_19 = arith.constant 2 : i32
    %36 = arith.cmpi slt, %arg1, %c2_i32_19 : i32
    %37 = arith.extui %36 : i1 to i32
    %c0_i32_20 = arith.constant 0 : i32
    %38 = arith.cmpi ne, %37, %c0_i32_20 : i32
    scf.if %38 {
      %c0_23 = arith.constant 0 : index
      %c0_24 = arith.constant 0 : index
      %c0_25 = arith.constant 0 : index
      %42 = vector.load %arg6[%c0_23, %c0_24, %c0_25] : memref<1x1x128xf32, #tpu.memory_space<vmem>>, vector<1x1x128xf32>
      %43 = vector.shape_cast %42 : vector<1x1x128xf32> to vector<1x128xf32>
      %cst_26 = arith.constant dense<0.000000e+00> : vector<128xf32>
      %44 = vector.multi_reduction <add>, %32, %cst_26 [0] : vector<8x128xf32> to vector<128xf32>
      %45 = vector.shape_cast %44 : vector<128xf32> to vector<1x128xf32>
      %46 = arith.addf %43, %45 : vector<1x128xf32>
      %c0_27 = arith.constant 0 : index
      %c0_28 = arith.constant 0 : index
      %c0_29 = arith.constant 0 : index
      %47 = vector.load %arg6[%c0_27, %c0_28, %c0_29] : memref<1x1x128xf32, #tpu.memory_space<vmem>>, vector<1x1x128xf32>
      %48 = vector.shape_cast %47 : vector<1x1x128xf32> to vector<1x128xf32>
      %49 = vector.shape_cast %46 : vector<1x128xf32> to vector<1x1x128xf32>
      tpu.vector_store %arg6[%c0_27, %c0_28, %c0_29], %49 {strides = array<i32>} : memref<1x1x128xf32, #tpu.memory_space<vmem>>, vector<1x1x128xf32>,
      %c0_30 = arith.constant 0 : index
      %c0_31 = arith.constant 0 : index
      %c0_32 = arith.constant 0 : index
      %50 = vector.load %arg7[%c0_30, %c0_31, %c0_32] : memref<1x1x128xf32, #tpu.memory_space<vmem>>, vector<1x1x128xf32>
      %51 = vector.shape_cast %50 : vector<1x1x128xf32> to vector<1x128xf32>
      %52 = arith.mulf %32, %32 : vector<8x128xf32>
      %cst_33 = arith.constant dense<0.000000e+00> : vector<128xf32>
      %53 = vector.multi_reduction <add>, %52, %cst_33 [0] : vector<8x128xf32> to vector<128xf32>
      %54 = vector.shape_cast %53 : vector<128xf32> to vector<1x128xf32>
      %55 = arith.addf %51, %54 : vector<1x128xf32>
      %c0_34 = arith.constant 0 : index
      %c0_35 = arith.constant 0 : index
      %c0_36 = arith.constant 0 : index
      %56 = vector.load %arg7[%c0_34, %c0_35, %c0_36] : memref<1x1x128xf32, #tpu.memory_space<vmem>>, vector<1x1x128xf32>
      %57 = vector.shape_cast %56 : vector<1x1x128xf32> to vector<1x128xf32>
      %58 = vector.shape_cast %55 : vector<1x128xf32> to vector<1x1x128xf32>
      tpu.vector_store %arg7[%c0_34, %c0_35, %c0_36], %58 {strides = array<i32>} : memref<1x1x128xf32, #tpu.memory_space<vmem>>, vector<1x1x128xf32>,
    } else {
    }
    %c2_i32_21 = arith.constant 2 : i32
    %39 = arith.cmpi eq, %arg1, %c2_i32_21 : i32
    %40 = arith.extui %39 : i1 to i32
    %c0_i32_22 = arith.constant 0 : i32
    %41 = arith.cmpi ne, %40, %c0_i32_22 : i32
    scf.if %41 {
      %42 = tpu.iota {dimensions = array<i32: 0>} : vector<8x1xi32>
      %43 = vector.broadcast %4 : i32 to vector<8x1xi32>
      %44 = arith.addi %43, %42 : vector<8x1xi32>
      %c18_i32 = arith.constant 18 : i32
      %45 = vector.broadcast %c18_i32 : i32 to vector<8x1xi32>
      %46 = arith.cmpi slt, %44, %45 : vector<8x1xi32>
      %cst_23 = arith.constant 0.000000e+00 : f32
      %47 = vector.shape_cast %46 : vector<8x1xi1> to vector<8x1xi1>
      %48 = vector.broadcast %47 : vector<8x1xi1> to vector<8x128xi1>
      %49 = vector.broadcast %cst_23 : f32 to vector<8x128xf32>
      %50 = arith.select %48, %32, %49 : vector<8x128xi1>, vector<8x128xf32>
      %c0_24 = arith.constant 0 : index
      %c0_25 = arith.constant 0 : index
      %c0_26 = arith.constant 0 : index
      %51 = vector.load %arg6[%c0_24, %c0_25, %c0_26] : memref<1x1x128xf32, #tpu.memory_space<vmem>>, vector<1x1x128xf32>
      %52 = vector.shape_cast %51 : vector<1x1x128xf32> to vector<1x128xf32>
      %cst_27 = arith.constant dense<0.000000e+00> : vector<128xf32>
      %53 = vector.multi_reduction <add>, %50, %cst_27 [0] : vector<8x128xf32> to vector<128xf32>
      %54 = vector.shape_cast %53 : vector<128xf32> to vector<1x128xf32>
      %55 = arith.addf %52, %54 : vector<1x128xf32>
      %c0_28 = arith.constant 0 : index
      %c0_29 = arith.constant 0 : index
      %c0_30 = arith.constant 0 : index
      %56 = vector.load %arg6[%c0_28, %c0_29, %c0_30] : memref<1x1x128xf32, #tpu.memory_space<vmem>>, vector<1x1x128xf32>
      %57 = vector.shape_cast %56 : vector<1x1x128xf32> to vector<1x128xf32>
      %58 = vector.shape_cast %55 : vector<1x128xf32> to vector<1x1x128xf32>
      tpu.vector_store %arg6[%c0_28, %c0_29, %c0_30], %58 {strides = array<i32>} : memref<1x1x128xf32, #tpu.memory_space<vmem>>, vector<1x1x128xf32>,
      %c0_31 = arith.constant 0 : index
      %c0_32 = arith.constant 0 : index
      %c0_33 = arith.constant 0 : index
      %59 = vector.load %arg7[%c0_31, %c0_32, %c0_33] : memref<1x1x128xf32, #tpu.memory_space<vmem>>, vector<1x1x128xf32>
      %60 = vector.shape_cast %59 : vector<1x1x128xf32> to vector<1x128xf32>
      %61 = arith.mulf %50, %50 : vector<8x128xf32>
      %cst_34 = arith.constant dense<0.000000e+00> : vector<128xf32>
      %62 = vector.multi_reduction <add>, %61, %cst_34 [0] : vector<8x128xf32> to vector<128xf32>
      %63 = vector.shape_cast %62 : vector<128xf32> to vector<1x128xf32>
      %64 = arith.addf %60, %63 : vector<1x128xf32>
      %c0_35 = arith.constant 0 : index
      %c0_36 = arith.constant 0 : index
      %c0_37 = arith.constant 0 : index
      %65 = vector.load %arg7[%c0_35, %c0_36, %c0_37] : memref<1x1x128xf32, #tpu.memory_space<vmem>>, vector<1x1x128xf32>
      %66 = vector.shape_cast %65 : vector<1x1x128xf32> to vector<1x128xf32>
      %67 = vector.shape_cast %64 : vector<1x128xf32> to vector<1x1x128xf32>
      tpu.vector_store %arg7[%c0_35, %c0_36, %c0_37], %67 {strides = array<i32>} : memref<1x1x128xf32, #tpu.memory_space<vmem>>, vector<1x1x128xf32>,
    } else {
    }
    return
  }
  func.func @transform_0(%arg0: i32, %arg1: i32) -> (i32, i32, i32) {
    %c0_i32 = arith.constant 0 : i32
    %c0_i32_0 = arith.constant 0 : i32
    %c0_i32_1 = arith.constant 0 : i32
    return %arg0, %c0_i32, %c0_i32_0 : i32, i32, i32
  }
  func.func @transform_1(%arg0: i32, %arg1: i32) -> (i32, i32) {
    %c0_i32 = arith.constant 0 : i32
    %c0_i32_0 = arith.constant 0 : i32
    %c0_i32_1 = arith.constant 0 : i32
    return %c0_i32, %c0_i32_0 : i32, i32
  }
  func.func @transform_2(%arg0: i32, %arg1: i32) -> (i32, i32) {
    %c0_i32 = arith.constant 0 : i32
    %c0_i32_0 = arith.constant 0 : i32
    %c0_i32_1 = arith.constant 0 : i32
    return %c0_i32, %c0_i32_0 : i32, i32
  }
  func.func @transform_3(%arg0: i32, %arg1: i32) -> (i32, i32, i32) {
    %c0_i32 = arith.constant 0 : i32
    %c0_i32_0 = arith.constant 0 : i32
    return %arg0, %arg1, %c0_i32 : i32, i32, i32
  }
  func.func @transform_4(%arg0: i32, %arg1: i32) -> (i32, i32, i32) {
    %c0_i32 = arith.constant 0 : i32
    %c0_i32_0 = arith.constant 0 : i32
    %c0_i32_1 = arith.constant 0 : i32
    return %arg0, %c0_i32, %c0_i32_0 : i32, i32, i32
  }
  func.func @transform_5(%arg0: i32, %arg1: i32) -> (i32, i32, i32) {
    %c0_i32 = arith.constant 0 : i32
    %c0_i32_0 = arith.constant 0 : i32
    %c0_i32_1 = arith.constant 0 : i32
    return %arg0, %c0_i32, %c0_i32_0 : i32, i32, i32
  }
}

</mosaic_0001>

<llo_original>
// kernel: tpu_custom_call.1
$region0: #{tpu_custom_call.1}
  #allocation0 [shape = 'u32[]', space=smem, size = 0x4, offset = 0x4, fixed_abs, tag = 'smem constant byte address 0x4 - core index']
  #allocation1 [shape = 'u32[72,128]{1,0:T(1,128)}', space=vmem, size = 0x9000, scoped, tag = 'internal scratch']
  %s0 = inlined_call_operand.vmem [shape: f32[2,28,128], index: 0, kind: input, shape index: {}]
  %s1 = inlined_call_operand.hbm [shape: f32[640,128], index: 1, kind: input, shape index: {}]
  %s2 = inlined_call_operand.vmem [shape: f32[1,128], index: 2, kind: input, shape index: {}]
  %s3 = inlined_call_operand.hbm [shape: f32[2,24,128], index: 3, kind: output, shape index: {0}]
  %s4 = inlined_call_operand.hbm [shape: f32[2,1,128], index: 4, kind: output, shape index: {1}]
  %s5 = inlined_call_operand.hbm [shape: f32[2,1,128], index: 5, kind: output, shape index: {2}]
  %6 = xla_tuple %s3, %s4, %s5
  %s7 = sld [smem:[#allocation0]]
  $region77: #{tpu_custom_call.1} parent=0
    _
  %s9 = ssub.s32 1, %s7
  %s10 = scalar_select 0, %s9, %s7
  $region1: #{tpu_custom_call.1} parent=0
    #allocation2 [shape = 'u8[327680]{0}', space=vmem, size = 0x50000, scoped, tag = 'input window, operand 1, single buffered']
    #allocation3 [shape = 's32[2]{0}', space=sflag, size = 0x8, scoped, tag = 'scoped memory for tpu_custom_call.1']
    #allocation4 [shape = 's32[2]{0}', space=sflag, size = 0x8, scoped, tag = 'scoped memory for tpu_custom_call.1']
    #allocation5 [shape = 'u8[8192]{0}', space=vmem, size = 0x2000, scoped, tag = 'output window, operand 0']
    #allocation6 [shape = 'u8[1024]{0}', space=vmem, size = 0x400, scoped, tag = 'output window, operand 1']
    #allocation7 [shape = 's32[2]{0}', space=sflag, size = 0x8, scoped, tag = 'scoped memory for tpu_custom_call.1']
    #allocation8 [shape = 'u8[1024]{0}', space=vmem, size = 0x400, scoped, tag = 'output window, operand 2']
    %11 = vsyncpa [#allocation3], 0
    %12 = vsyncpa [#allocation4], 0
    %s13 = scalar_lea.sflag [#allocation4], 1
    %14 = vsyncpa %s13, 0
    %15 = vsyncpa [#allocation7], 0
    %s16 = scalar_lea.sflag [#allocation7], 1
    %17 = vsyncpa %s16, 0
    loop: start=0, step=1, limit=8
    $region2: #{tpu_custom_call.1} parent=1 // loop_pre_header
      _
    $region3: #{tpu_custom_call.1} parent=1 // loop_header
      %s19 = sphi 0, %s23
      %p20 = scmp.ge.s32.totalorder %s19, 8
      %s26 = sphi 0, %s38
      %s27 = sphi 0, %s34
      %s28 = sphi 0, %s26
      %s29 = sphi 0, %s27
      %s30 = sphi 0, %s28
      %s31 = sphi 0, %s29
      %s41 = sphi 0, %s43
      %s44 = sphi 0, %s41
      %s45 = sphi 0, %s44
      %s61 = sphi 0, %s45
      %s65 = sphi 0, %s65
      %s67 = sphi 0, %s65
      %s68 = sphi 0, %s67
      %s82 = sphi 0, %s68
      %s86 = sphi 0, %s86
      %s88 = sphi 0, %s86
      %s89 = sphi 0, %s88
      %s103 = sphi 0, %s89
      %s111 = sphi 0, %s113
      %s114 = sphi 0, %s111
      %s115 = sphi 0, %s114
      %s131 = sphi 0, %s115
      %s137 = sphi 0, %s139
      %s140 = sphi 0, %s137
      %s141 = sphi 0, %s140
      %s157 = sphi 0, %s141
      %s163 = sphi 0, %s165
      %s166 = sphi 0, %s163
      %s167 = sphi 0, %s166
      %s183 = sphi 0, %s167
    $region4: #{tpu_custom_call.1} parent=1 // loop_header_branch
      %22 = sbr.rel (%p20) target = $region8
    $region5: #{tpu_custom_call.1} parent=1 // loop_body
      %s24 = ssub.s32 %s19, 1
      %s25 = ssub.s32 %s19, 2
      %s32 = sadd.s32 1, %s27
      %p33 = scmp.ge.s32.totalorder %s32, 3
      %s34 = scalar_select %p33, 0, %s32
      %s35 = sadd.s32 1, %s26
      %s36 = scalar_select %p33, %s35, %s26
      %p37 = scmp.ge.s32.totalorder %s36, 2
      %s38 = scalar_select %p37, 0, %s36
      %s39 = ssub.s32 %s26, %s38
      %p40 = scmp.eq.s32.totalorder %s39, 0
      %s42 = sadd.s32 %s41, 1
      %s43 = scalar_select %p40, %s41, %s42
      %p46 = pneg %p40
      %p47 = scmp.eq.s32.totalorder %s19, 5
      %p48 = por %p46, %p47
      %p49 = scmp.ne.s32.totalorder %s41, %s44
      %p50 = scmp.eq.s32.totalorder %s19, 0
      %p51 = por %p49, %p50
      %p52 = scmp.ne.s32.totalorder %s41, %s44
      %p53 = scmp.eq.s32.totalorder %s24, 5
      %p54 = por %p52, %p53
      %p55 = scmp.ne.s32.totalorder %s44, %s45
      %p56 = scmp.eq.s32.totalorder %s24, 0
      %p57 = por %p55, %p56
      %p58 = scmp.ne.s32.totalorder %s44, %s45
      %p59 = scmp.eq.s32.totalorder %s25, 5
      %p60 = por %p58, %p59
      %p62 = scmp.ne.s32.totalorder %s45, %s61
      %p63 = scmp.eq.s32.totalorder %s25, 0
      %p64 = por %p62, %p63
      %s66 = sadd.s32 %s65, 1
      %p69 = scmp.eq.s32.totalorder %s19, 5
      %p70 = scmp.ne.s32.totalorder %s65, %s67
      %p71 = scmp.eq.s32.totalorder %s19, 0
      %p72 = por %p70, %p71
      %p73 = scmp.ne.s32.totalorder %s65, %s67
      %p74 = scmp.eq.s32.totalorder %s24, 5
      %p75 = por %p73, %p74
      %p76 = scmp.ne.s32.totalorder %s67, %s68
      %p77 = scmp.eq.s32.totalorder %s24, 0
      %p78 = por %p76, %p77
      %p79 = scmp.ne.s32.totalorder %s67, %s68
      %p80 = scmp.eq.s32.totalorder %s25, 5
      %p81 = por %p79, %p80
      %p83 = scmp.ne.s32.totalorder %s68, %s82
      %p84 = scmp.eq.s32.totalorder %s25, 0
      %p85 = por %p83, %p84
      %s87 = sadd.s32 %s86, 1
      %p90 = scmp.eq.s32.totalorder %s19, 5
      %p91 = scmp.ne.s32.totalorder %s86, %s88
      %p92 = scmp.eq.s32.totalorder %s19, 0
      %p93 = por %p91, %p92
      %p94 = scmp.ne.s32.totalorder %s86, %s88
      %p95 = scmp.eq.s32.totalorder %s24, 5
      %p96 = por %p94, %p95
      %p97 = scmp.ne.s32.totalorder %s88, %s89
      %p98 = scmp.eq.s32.totalorder %s24, 0
      %p99 = por %p97, %p98
      %p100 = scmp.ne.s32.totalorder %s88, %s89
      %p101 = scmp.eq.s32.totalorder %s25, 5
      %p102 = por %p100, %p101
      %p104 = scmp.ne.s32.totalorder %s89, %s103
      %p105 = scmp.eq.s32.totalorder %s25, 0
      %p106 = por %p104, %p105
      %s107 = ssub.s32 %s26, %s38
      %s108 = ssub.s32 %s27, %s34
      %s109 = sor.u32 %s107, %s108
      %p110 = scmp.eq.s32.totalorder %s109, 0
      %s112 = sadd.s32 %s111, 1
      %s113 = scalar_select %p110, %s111, %s112
      %p116 = pneg %p110
      %p117 = scmp.eq.s32.totalorder %s19, 5
      %p118 = por %p116, %p117
      %p119 = scmp.ne.s32.totalorder %s111, %s114
      %p120 = scmp.eq.s32.totalorder %s19, 0
      %p121 = por %p119, %p120
      %p122 = scmp.ne.s32.totalorder %s111, %s114
      %p123 = scmp.eq.s32.totalorder %s24, 5
      %p124 = por %p122, %p123
      %p125 = scmp.ne.s32.totalorder %s114, %s115
      %p126 = scmp.eq.s32.totalorder %s24, 0
      %p127 = por %p125, %p126
      %p128 = scmp.ne.s32.totalorder %s114, %s115
      %p129 = scmp.eq.s32.totalorder %s25, 5
      %p130 = por %p128, %p129
      %p132 = scmp.ne.s32.totalorder %s115, %s131
      %p133 = scmp.eq.s32.totalorder %s25, 0
      %p134 = por %p132, %p133
      %s135 = ssub.s32 %s26, %s38
      %p136 = scmp.eq.s32.totalorder %s135, 0
      %s138 = sadd.s32 %s137, 1
      %s139 = scalar_select %p136, %s137, %s138
      %p142 = pneg %p136
      %p143 = scmp.eq.s32.totalorder %s19, 5
      %p144 = por %p142, %p143
      %p145 = scmp.ne.s32.totalorder %s137, %s140
      %p146 = scmp.eq.s32.totalorder %s19, 0
      %p147 = por %p145, %p146
      %p148 = scmp.ne.s32.totalorder %s137, %s140
      %p149 = scmp.eq.s32.totalorder %s24, 5
      %p150 = por %p148, %p149
      %p151 = scmp.ne.s32.totalorder %s140, %s141
      %p152 = scmp.eq.s32.totalorder %s24, 0
      %p153 = por %p151, %p152
      %p154 = scmp.ne.s32.totalorder %s140, %s141
      %p155 = scmp.eq.s32.totalorder %s25, 5
      %p156 = por %p154, %p155
      %p158 = scmp.ne.s32.totalorder %s141, %s157
      %p159 = scmp.eq.s32.totalorder %s25, 0
      %p160 = por %p158, %p159
      %s161 = ssub.s32 %s26, %s38
      %p162 = scmp.eq.s32.totalorder %s161, 0
      %s164 = sadd.s32 %s163, 1
      %s165 = scalar_select %p162, %s163, %s164
      %p168 = pneg %p162
      %p169 = scmp.eq.s32.totalorder %s19, 5
      %p170 = por %p168, %p169
      %p171 = scmp.ne.s32.totalorder %s163, %s166
      %p172 = scmp.eq.s32.totalorder %s19, 0
      %p173 = por %p171, %p172
      %p174 = scmp.ne.s32.totalorder %s163, %s166
      %p175 = scmp.eq.s32.totalorder %s24, 5
      %p176 = por %p174, %p175
      %p177 = scmp.ne.s32.totalorder %s166, %s167
      %p178 = scmp.eq.s32.totalorder %s24, 0
      %p179 = por %p177, %p178
      %p180 = scmp.ne.s32.totalorder %s166, %s167
      %p181 = scmp.eq.s32.totalorder %s25, 5
      %p182 = por %p180, %p181
      %p184 = scmp.ne.s32.totalorder %s167, %s183
      %p185 = scmp.eq.s32.totalorder %s25, 0
      %p186 = por %p184, %p185
      %p187 = scmp.le.s32.totalorder 1, %s19
      %p188 = scmp.lt.s32.totalorder %s19, 7
      %p189 = pnand %p187, %p188
      %p190 = pneg %p189
      // Predicated region
      $region9: #{tpu_custom_call.1} parent=5 // pred_check
        _
      $region10: #{tpu_custom_call.1} parent=5 // pred_check_branch
        %192 = sbr.rel (%p189) target = $region12
      $region11: #{tpu_custom_call.1} parent=5 // pred_region
        %s193 = ssub.s32 %s19, 1
        // Predicated region
        $region13: #{tpu_custom_call.1} parent=11 // pred_check
          %p194 = pneg %p78
        $region14: #{tpu_custom_call.1} parent=11 // pred_check_branch
          %196 = sbr.rel (%p194) target = $region16
        $region15: #{tpu_custom_call.1} parent=11 // pred_region
          %198 = vsyncadd [#allocation3], 0
          %s199 = sshll.u32 %s1, 4
          %s200 = int_to_ptr.hbm [resolvable:$true] %s199
          %s201 = sshll.u32 [#allocation2], 4
          %s202 = int_to_ptr.vmem [resolvable:$true] %s201
          %207 = dma.hbm_to_vmem [thread:$0]  %s200, 10240, %s202, [#allocation3], 128, 128, 8
        $region16: #{tpu_custom_call.1} parent=11 // pred_fallthru
          _
        // Predicated region
        $region17: #{tpu_custom_call.1} parent=11 // pred_check
          %p208 = pneg %p99
        $region18: #{tpu_custom_call.1} parent=11 // pred_check_branch
          %210 = sbr.rel (%p208) target = $region20
        $region19: #{tpu_custom_call.1} parent=11 // pred_region
          _
        $region20: #{tpu_custom_call.1} parent=11 // pred_fallthru
          _
      $region12: #{tpu_custom_call.1} parent=5 // pred_fallthru
        _
      %p211 = scmp.lt.s32.totalorder %s19, 6
      // Predicated region
      $region21: #{tpu_custom_call.1} parent=5 // pred_check
        %p212 = pneg %p211
      $region22: #{tpu_custom_call.1} parent=5 // pred_check_branch
        %214 = sbr.rel (%p212) target = $region24
      $region23: #{tpu_custom_call.1} parent=5 // pred_region
        // Predicated region
        $region25: #{tpu_custom_call.1} parent=23 // pred_check
          %p215 = pneg %p51
        $region26: #{tpu_custom_call.1} parent=23 // pred_check_branch
          %217 = sbr.rel (%p215) target = $region28
        $region27: #{tpu_custom_call.1} parent=23 // pred_region
          %p218 = scmp.lt.s32.totalorder %s26, 1
          %s219 = scalar_select %p218, %s26, 1
          %s220 = smul.addr %s219, 4
          %s221 = smul.addr %s220, 8
          %s222 = scalar_lea.vmem %s0, %s221
        $region28: #{tpu_custom_call.1} parent=23 // pred_fallthru
          _
      $region24: #{tpu_custom_call.1} parent=5 // pred_fallthru
        _
      %p223 = scmp.le.s32.totalorder 1, %s19
      %p224 = scmp.lt.s32.totalorder %s19, 7
      %p225 = pnand %p223, %p224
      %p226 = pneg %p225
      // Predicated region
      $region29: #{tpu_custom_call.1} parent=5 // pred_check
        _
      $region30: #{tpu_custom_call.1} parent=5 // pred_check_branch
        %228 = sbr.rel (%p225) target = $region32
      $region31: #{tpu_custom_call.1} parent=5 // pred_region
        %s229 = ssub.s32 %s19, 1
        // Predicated region
        $region33: #{tpu_custom_call.1} parent=31 // pred_check
          %p230 = pneg %p78
        $region34: #{tpu_custom_call.1} parent=31 // pred_check_branch
          %232 = sbr.rel (%p230) target = $region36
        $region35: #{tpu_custom_call.1} parent=31 // pred_region
          %234 = dma.done [#allocation3], 10240
        $region36: #{tpu_custom_call.1} parent=31 // pred_fallthru
          _
        %p235 = scmp.lt.s32.totalorder %s28, 1
        %s236 = scalar_select %p235, %s28, 1
        %s237 = smul.addr %s236, 4
        %s238 = smul.addr %s237, 8
        %s239 = scalar_lea.vmem %s0, %s238
        %p240 = pneg %p57
        %p241 = pneg %p54
        %p242 = pneg %p78
        %p243 = pneg %p75
        %p244 = pneg %p99
        %p245 = pneg %p96
        %p246 = pneg %p127
        %p247 = pneg %p124
        %s248 = sand.u32 %s114, 1
        %s249 = scalar_lea.sflag [#allocation4], %s248
        %s250 = sand.u32 %s114, 1
        %s251 = smul.addr %s250, 8
        %s252 = scalar_lea.vmem [#allocation5], %s251
        %p253 = pneg %p153
        %p254 = pneg %p150
        %s255 = sand.u32 %s24, 1
        %s256 = scalar_lea.sflag [#allocation7], %s255
        %s257 = sand.u32 %s140, 1
        %s258 = scalar_lea.vmem [#allocation6], %s257
        %p259 = pneg %p179
        %p260 = pneg %p176
        %s261 = sand.u32 %s24, 1
        %s262 = scalar_lea.sflag [#allocation7], %s261
        %s263 = sand.u32 %s166, 1
        %s264 = scalar_lea.vmem [#allocation8], %s263
        %p265 = scmp.lt.s32.totalorder %s28, 1
        %s266 = scalar_select %p265, %s28, 1
        %s267 = smul.addr %s266, 4
        %s268 = smul.addr %s267, 8
        %s269 = scalar_lea.vmem %s0, %s268
        %p270 = scmp.eq.s32.totalorder %s29, 0
        // Predicated region
        $region37: #{tpu_custom_call.1} parent=31 // pred_check
          %p271 = pneg %p270
        $region38: #{tpu_custom_call.1} parent=31 // pred_check_branch
          %273 = sbr.rel (%p271) target = $region40
        $region39: #{tpu_custom_call.1} parent=31 // pred_region
          %274 = vst [vmem:[%s258] sm:$0x1] 0.0
          %275 = vst [vmem:[%s264] sm:$0x1] 0.0
        $region40: #{tpu_custom_call.1} parent=31 // pred_fallthru
          _
        %s276 = smul.u32 %s29, 8
        %s277 = scalar_lea.vmem %s269, %s276
        %v278 = vld [vmem:[%s277] sm:$0xff]
        %s279 = sadd.s32 %s276, 1
        %s280 = scalar_lea.vmem %s269, %s279
        %v281 = vld [vmem:[%s280] sm:$0xff]
        %s282 = sadd.s32 %s276, 2
        %s283 = scalar_lea.vmem %s269, %s282
        %v284 = vld [vmem:[%s283] sm:$0xff]
        %s285 = sadd.s32 %s276, 3
        %s286 = scalar_lea.vmem %s269, %s285
        %v287 = vld [vmem:[%s286] sm:$0xff]
        %s288 = sadd.s32 %s276, 4
        %s289 = scalar_lea.vmem %s269, %s288
        %v290 = vld [vmem:[%s289] sm:$0xff]
        %v291 = vld [vmem:[#allocation2] sm:$0xff]
        %v292 = vld [vmem:[#allocation2 + $0x8] sm:$0xff]
        %v293 = vld [vmem:[#allocation2 + $0x10] sm:$0xff]
        %v294 = vld [vmem:[#allocation2 + $0x18] sm:$0xff]
        %v295 = vld [vmem:[#allocation2 + $0x20] sm:$0xff]
        %v296 = vld [vmem:[#allocation2 + $0x28] sm:$0xff]
        %v297 = vld [vmem:[#allocation2 + $0x30] sm:$0xff]
        %v298 = vld [vmem:[#allocation2 + $0x38] sm:$0xff]
        %v299 = vld [vmem:[#allocation2 + $0x40] sm:$0xff]
        %v300 = vld [vmem:[#allocation2 + $0x48] sm:$0xff]
        %v301 = vld [vmem:[#allocation2 + $0x50] sm:$0xff]
        %v302 = vld [vmem:[#allocation2 + $0x58] sm:$0xff]
        %v303 = vld [vmem:[#allocation2 + $0x60] sm:$0xff]
        %v304 = vld [vmem:[#allocation2 + $0x68] sm:$0xff]
        %v305 = vld [vmem:[#allocation2 + $0x70] sm:$0xff]
        %v306 = vld [vmem:[#allocation2 + $0x78] sm:$0xff]
        %v307 = vld [vmem:[#allocation2 + $0x80] sm:$0xff]
        %v308 = vld [vmem:[#allocation2 + $0x88] sm:$0xff]
        %v309 = vld [vmem:[#allocation2 + $0x90] sm:$0xff]
        %v310 = vld [vmem:[#allocation2 + $0x98] sm:$0xff]
        %v311 = vld [vmem:[#allocation2 + $0xa0] sm:$0xff]
        %v312 = vld [vmem:[#allocation2 + $0xa8] sm:$0xff]
        %v313 = vld [vmem:[#allocation2 + $0xb0] sm:$0xff]
        %v314 = vld [vmem:[#allocation2 + $0xb8] sm:$0xff]
        %v315 = vld [vmem:[#allocation2 + $0xc0] sm:$0xff]
        %v316 = vld [vmem:[#allocation2 + $0xc8] sm:$0xff]
        %v317 = vld [vmem:[#allocation2 + $0xd0] sm:$0xff]
        %v318 = vld [vmem:[#allocation2 + $0xd8] sm:$0xff]
        %v319 = vld [vmem:[#allocation2 + $0xe0] sm:$0xff]
        %v320 = vld [vmem:[#allocation2 + $0xe8] sm:$0xff]
        %v321 = vld [vmem:[#allocation2 + $0xf0] sm:$0xff]
        %v322 = vld [vmem:[#allocation2 + $0xf8] sm:$0xff]
        %v323 = vld [vmem:[#allocation2 + $0x100] sm:$0xff]
        %v324 = vld [vmem:[#allocation2 + $0x108] sm:$0xff]
        %v325 = vld [vmem:[#allocation2 + $0x110] sm:$0xff]
        %v326 = vld [vmem:[#allocation2 + $0x118] sm:$0xff]
        %v327 = vld [vmem:[#allocation2 + $0x120] sm:$0xff]
        %v328 = vld [vmem:[#allocation2 + $0x128] sm:$0xff]
        %v329 = vld [vmem:[#allocation2 + $0x130] sm:$0xff]
        %v330 = vld [vmem:[#allocation2 + $0x138] sm:$0xff]
        %v331 = vld [vmem:[#allocation2 + $0x140] sm:$0xff]
        %v332 = vld [vmem:[#allocation2 + $0x148] sm:$0xff]
        %v333 = vld [vmem:[#allocation2 + $0x150] sm:$0xff]
        %v334 = vld [vmem:[#allocation2 + $0x158] sm:$0xff]
        %v335 = vld [vmem:[#allocation2 + $0x160] sm:$0xff]
        %v336 = vld [vmem:[#allocation2 + $0x168] sm:$0xff]
        %v337 = vld [vmem:[#allocation2 + $0x170] sm:$0xff]
        %v338 = vld [vmem:[#allocation2 + $0x178] sm:$0xff]
        %v339 = vld [vmem:[#allocation2 + $0x180] sm:$0xff]
        %v340 = vld [vmem:[#allocation2 + $0x188] sm:$0xff]
        %v341 = vld [vmem:[#allocation2 + $0x190] sm:$0xff]
        %v342 = vld [vmem:[#allocation2 + $0x198] sm:$0xff]
        %v343 = vld [vmem:[#allocation2 + $0x1a0] sm:$0xff]
        %v344 = vld [vmem:[#allocation2 + $0x1a8] sm:$0xff]
        %v345 = vld [vmem:[#allocation2 + $0x1b0] sm:$0xff]
        %v346 = vld [vmem:[#allocation2 + $0x1b8] sm:$0xff]
        %v347 = vld [vmem:[#allocation2 + $0x1c0] sm:$0xff]
        %v348 = vld [vmem:[#allocation2 + $0x1c8] sm:$0xff]
        %v349 = vld [vmem:[#allocation2 + $0x1d0] sm:$0xff]
        %v350 = vld [vmem:[#allocation2 + $0x1d8] sm:$0xff]
        %v351 = vld [vmem:[#allocation2 + $0x1e0] sm:$0xff]
        %v352 = vld [vmem:[#allocation2 + $0x1e8] sm:$0xff]
        %v353 = vld [vmem:[#allocation2 + $0x1f0] sm:$0xff]
        %v354 = vld [vmem:[#allocation2 + $0x1f8] sm:$0xff]
        %v355 = vld [vmem:[#allocation2 + $0x200] sm:$0xff]
        %v356 = vld [vmem:[#allocation2 + $0x208] sm:$0xff]
        %v357 = vld [vmem:[#allocation2 + $0x210] sm:$0xff]
        %v358 = vld [vmem:[#allocation2 + $0x218] sm:$0xff]
        %v359 = vld [vmem:[#allocation2 + $0x220] sm:$0xff]
        %v360 = vld [vmem:[#allocation2 + $0x228] sm:$0xff]
        %v361 = vld [vmem:[#allocation2 + $0x230] sm:$0xff]
        %v362 = vld [vmem:[#allocation2 + $0x238] sm:$0xff]
        %v363 = vld [vmem:[#allocation2 + $0x240] sm:$0xff]
        %v364 = vld [vmem:[#allocation2 + $0x248] sm:$0xff]
        %v365 = vld [vmem:[#allocation2 + $0x250] sm:$0xff]
        %v366 = vld [vmem:[#allocation2 + $0x258] sm:$0xff]
        %v367 = vld [vmem:[#allocation2 + $0x260] sm:$0xff]
        %v368 = vld [vmem:[#allocation2 + $0x268] sm:$0xff]
        %v369 = vld [vmem:[#allocation2 + $0x270] sm:$0xff]
        %v370 = vld [vmem:[#allocation2 + $0x278] sm:$0xff]
        %v371 = vld [vmem:[%s2] sm:$0x1]
        %v373 = vperm.slane %v371, 0
        %375 = vmatpush.msra.mxu0 %v306
        %376 = vmatpush.msra.mxu0 %v305
        %377 = vmatpush.msra.mxu0 %v304
        %378 = vmatpush.msra.mxu0 %v303
        %379 = vmatpush.msra.mxu0 %v302
        %380 = vmatpush.msra.mxu0 %v301
        %381 = vmatpush.msra.mxu0 %v300
        %382 = vmatpush.msra.mxu0 %v299
        %383 = vmatpush.msra.mxu0 %v298
        %384 = vmatpush.msra.mxu0 %v297
        %385 = vmatpush.msra.mxu0 %v296
        %386 = vmatpush.msra.mxu0 %v295
        %387 = vmatpush.msra.mxu0 %v294
        %388 = vmatpush.msra.mxu0 %v293
        %389 = vmatpush.msra.mxu0 %v292
        %390 = vmatpush.msra.mxu0 %v291
        %391 = vmatmul.f32.gmra.mxu0 %v278
        %v392 = vpop.f32.mrf.mxu0
        %v393 = vadd.f32 %v373, %v392
        %394 = vdwg.mxu0
        %395 = vmatpush.msra.mxu0 %v322
        %396 = vmatpush.msra.mxu0 %v321
        %397 = vmatpush.msra.mxu0 %v320
        %398 = vmatpush.msra.mxu0 %v319
        %399 = vmatpush.msra.mxu0 %v318
        %400 = vmatpush.msra.mxu0 %v317
        %401 = vmatpush.msra.mxu0 %v316
        %402 = vmatpush.msra.mxu0 %v315
        %403 = vmatpush.msra.mxu0 %v314
        %404 = vmatpush.msra.mxu0 %v313
        %405 = vmatpush.msra.mxu0 %v312
        %406 = vmatpush.msra.mxu0 %v311
        %407 = vmatpush.msra.mxu0 %v310
        %408 = vmatpush.msra.mxu0 %v309
        %409 = vmatpush.msra.mxu0 %v308
        %410 = vmatpush.msra.mxu0 %v307
        %411 = vmatmul.f32.gmra.mxu0 %v281
        %v412 = vpop.f32.mrf.mxu0
        %v413 = vadd.f32 %v393, %v412
        %414 = vdwg.mxu0
        %415 = vmatpush.msra.mxu0 %v338
        %416 = vmatpush.msra.mxu0 %v337
        %417 = vmatpush.msra.mxu0 %v336
        %418 = vmatpush.msra.mxu0 %v335
        %419 = vmatpush.msra.mxu0 %v334
        %420 = vmatpush.msra.mxu0 %v333
        %421 = vmatpush.msra.mxu0 %v332
        %422 = vmatpush.msra.mxu0 %v331
        %423 = vmatpush.msra.mxu0 %v330
        %424 = vmatpush.msra.mxu0 %v329
        %425 = vmatpush.msra.mxu0 %v328
        %426 = vmatpush.msra.mxu0 %v327
        %427 = vmatpush.msra.mxu0 %v326
        %428 = vmatpush.msra.mxu0 %v325
        %429 = vmatpush.msra.mxu0 %v324
        %430 = vmatpush.msra.mxu0 %v323
        %431 = vmatmul.f32.gmra.mxu0 %v284
        %v432 = vpop.f32.mrf.mxu0
        %v433 = vadd.f32 %v413, %v432
        %434 = vdwg.mxu0
        %435 = vmatpush.msra.mxu0 %v354
        %436 = vmatpush.msra.mxu0 %v353
        %437 = vmatpush.msra.mxu0 %v352
        %438 = vmatpush.msra.mxu0 %v351
        %439 = vmatpush.msra.mxu0 %v350
        %440 = vmatpush.msra.mxu0 %v349
        %441 = vmatpush.msra.mxu0 %v348
        %442 = vmatpush.msra.mxu0 %v347
        %443 = vmatpush.msra.mxu0 %v346
        %444 = vmatpush.msra.mxu0 %v345
        %445 = vmatpush.msra.mxu0 %v344
        %446 = vmatpush.msra.mxu0 %v343
        %447 = vmatpush.msra.mxu0 %v342
        %448 = vmatpush.msra.mxu0 %v341
        %449 = vmatpush.msra.mxu0 %v340
        %450 = vmatpush.msra.mxu0 %v339
        %451 = vmatmul.f32.gmra.mxu0 %v287
        %v452 = vpop.f32.mrf.mxu0
        %v453 = vadd.f32 %v433, %v452
        %454 = vdwg.mxu0
        %455 = vmatpush.msra.mxu0 %v370
        %456 = vmatpush.msra.mxu0 %v369
        %457 = vmatpush.msra.mxu0 %v368
        %458 = vmatpush.msra.mxu0 %v367
        %459 = vmatpush.msra.mxu0 %v366
        %460 = vmatpush.msra.mxu0 %v365
        %461 = vmatpush.msra.mxu0 %v364
        %462 = vmatpush.msra.mxu0 %v363
        %463 = vmatpush.msra.mxu0 %v362
        %464 = vmatpush.msra.mxu0 %v361
        %465 = vmatpush.msra.mxu0 %v360
        %466 = vmatpush.msra.mxu0 %v359
        %467 = vmatpush.msra.mxu0 %v358
        %468 = vmatpush.msra.mxu0 %v357
        %469 = vmatpush.msra.mxu0 %v356
        %470 = vmatpush.msra.mxu0 %v355
        %471 = vmatmul.f32.gmra.mxu0 %v290
        %v472 = vpop.f32.mrf.mxu0
        %v473 = vadd.f32 %v453, %v472
        %474 = vdwg.mxu0
        %v475 = vmax.f32 %v473, 0.0
        %476 = vst [vmem:[%s252] sm:$0xff] %v475
        %p477 = scmp.lt.s32.totalorder %s29, 2
        // Predicated region
        $region41: #{tpu_custom_call.1} parent=31 // pred_check
          %p478 = pneg %p477
        $region42: #{tpu_custom_call.1} parent=31 // pred_check_branch
          %480 = sbr.rel (%p478) target = $region44
        $region43: #{tpu_custom_call.1} parent=31 // pred_region
          %v481 = vld [vmem:[%s258] sm:$0x1]
          %v482 = vrot.slane %v475, 4
          %v483 = vadd.f32 %v475, %v482
          %v484 = vrot.slane %v483, 2
          %v485 = vadd.f32 %v483, %v484
          %v486 = vrot.slane %v485, 1
          %v487 = vadd.f32 %v485, %v486
          %v488 = vadd.f32 %v481, %v487
          %489 = vst [vmem:[%s258] sm:$0x1] %v488
          %v490 = vld [vmem:[%s264] sm:$0x1]
          %v491 = vmul.f32 %v475, %v475
          %v492 = vrot.slane %v491, 4
          %v493 = vadd.f32 %v491, %v492
          %v494 = vrot.slane %v493, 2
          %v495 = vadd.f32 %v493, %v494
          %v496 = vrot.slane %v495, 1
          %v497 = vadd.f32 %v495, %v496
          %v498 = vadd.f32 %v490, %v497
          %499 = vst [vmem:[%s264] sm:$0x1] %v498
        $region44: #{tpu_custom_call.1} parent=31 // pred_fallthru
          _
        %p500 = scmp.eq.s32.totalorder %s29, 2
        // Predicated region
        $region45: #{tpu_custom_call.1} parent=31 // pred_check
          %p501 = pneg %p500
        $region46: #{tpu_custom_call.1} parent=31 // pred_check_branch
          %503 = sbr.rel (%p501) target = $region48
        $region47: #{tpu_custom_call.1} parent=31 // pred_region
          %v504 = vlaneseq
          %v505 = vshrl.u32 %v504, 7
          %v506 = vstv %s276
          %v507 = vadd.s32 %v506, %v505
          %vm508 = vcmp.lt.s32.totalorder %v507, 18
          %v509 = vsel %vm508, 1, 0
          %vm510 = vcmp.eq.s32.totalorder %v509, 1
          %v511 = vsel %vm510, %v475, 0.0
          %v512 = vld [vmem:[%s258] sm:$0x1]
          %v513 = vrot.slane %v511, 4
          %v514 = vadd.f32 %v511, %v513
          %v515 = vrot.slane %v514, 2
          %v516 = vadd.f32 %v514, %v515
          %v517 = vrot.slane %v516, 1
          %v518 = vadd.f32 %v516, %v517
          %v519 = vadd.f32 %v512, %v518
          %520 = vst [vmem:[%s258] sm:$0x1] %v519
          %v521 = vld [vmem:[%s264] sm:$0x1]
          %v522 = vmul.f32 %v511, %v511
          %v523 = vrot.slane %v522, 4
          %v524 = vadd.f32 %v522, %v523
          %v525 = vrot.slane %v524, 2
          %v526 = vadd.f32 %v524, %v525
          %v527 = vrot.slane %v526, 1
          %v528 = vadd.f32 %v526, %v527
          %v529 = vadd.f32 %v521, %v528
          %530 = vst [vmem:[%s264] sm:$0x1] %v529
        $region48: #{tpu_custom_call.1} parent=31 // pred_fallthru
          _
        %s531 = sand.u32 %s114, 1
        %s532 = scalar_lea.sflag [#allocation4], %s531
        %s533 = sand.u32 %s114, 1
        %s534 = smul.addr %s533, 8
        %s535 = scalar_lea.vmem [#allocation5], %s534
        %s536 = sand.u32 %s24, 1
        %s537 = scalar_lea.sflag [#allocation7], %s536
        %s538 = sand.u32 %s140, 1
        %s539 = scalar_lea.vmem [#allocation6], %s538
        %s540 = sand.u32 %s24, 1
        %s541 = scalar_lea.sflag [#allocation7], %s540
        %s542 = sand.u32 %s166, 1
        %s543 = scalar_lea.vmem [#allocation8], %s542
        // Predicated region
        $region49: #{tpu_custom_call.1} parent=31 // pred_check
          %p544 = pneg %p124
        $region50: #{tpu_custom_call.1} parent=31 // pred_check_branch
          %546 = sbr.rel (%p544) target = $region52
        $region51: #{tpu_custom_call.1} parent=31 // pred_region
          %548 = vsyncadd %s532, 0
          %s549 = smul.addr %s28, 3
          %s550 = sadd.s32 %s29, %s549
          %s551 = smul.addr %s550, 8
          %s552 = scalar_lea.hbm %s3, %s551
          %s554 = sshll.u32 %s535, 4
          %s555 = int_to_ptr.vmem [resolvable:$true] %s554
          %s556 = sshll.u32 %s552, 4
          %s557 = int_to_ptr.hbm [resolvable:$true] %s556
          %559 = dma.vmem_to_hbm [thread:$0]  %s555, 128, %s557, %s532
        $region52: #{tpu_custom_call.1} parent=31 // pred_fallthru
          _
        // Predicated region
        $region53: #{tpu_custom_call.1} parent=31 // pred_check
          %p560 = pneg %p150
        $region54: #{tpu_custom_call.1} parent=31 // pred_check_branch
          %562 = sbr.rel (%p560) target = $region56
        $region55: #{tpu_custom_call.1} parent=31 // pred_region
          %564 = vsyncadd %s537, 0
          %s565 = scalar_lea.hbm %s4, %s28
          %s567 = sshll.u32 %s539, 4
          %s568 = int_to_ptr.vmem [resolvable:$true] %s567
          %s569 = sshll.u32 %s565, 4
          %s570 = int_to_ptr.hbm [resolvable:$true] %s569
          %572 = dma.vmem_to_hbm [thread:$0]  %s568, 16, %s570, %s537
        $region56: #{tpu_custom_call.1} parent=31 // pred_fallthru
          _
        // Predicated region
        $region57: #{tpu_custom_call.1} parent=31 // pred_check
          %p573 = pneg %p176
        $region58: #{tpu_custom_call.1} parent=31 // pred_check_branch
          %575 = sbr.rel (%p573) target = $region60
        $region59: #{tpu_custom_call.1} parent=31 // pred_region
          %577 = vsyncadd %s541, 0
          %s578 = scalar_lea.hbm %s5, %s28
          %s580 = sshll.u32 %s543, 4
          %s581 = int_to_ptr.vmem [resolvable:$true] %s580
          %s582 = sshll.u32 %s578, 4
          %s583 = int_to_ptr.hbm [resolvable:$true] %s582
          %585 = dma.vmem_to_hbm [thread:$0]  %s581, 16, %s583, %s541
        $region60: #{tpu_custom_call.1} parent=31 // pred_fallthru
          _
      $region32: #{tpu_custom_call.1} parent=5 // pred_fallthru
        _
      %p586 = scmp.le.s32.totalorder 2, %s19
      // Predicated region
      $region61: #{tpu_custom_call.1} parent=5 // pred_check
        %p587 = pneg %p586
      $region62: #{tpu_custom_call.1} parent=5 // pred_check_branch
        %589 = sbr.rel (%p587) target = $region64
      $region63: #{tpu_custom_call.1} parent=5 // pred_region
        %s590 = ssub.s32 %s19, 2
        // Predicated region
        $region65: #{tpu_custom_call.1} parent=63 // pred_check
          %p591 = pneg %p130
        $region66: #{tpu_custom_call.1} parent=63 // pred_check_branch
          %593 = sbr.rel (%p591) target = $region68
        $region67: #{tpu_custom_call.1} parent=63 // pred_region
          %s594 = sand.u32 %s115, 1
          %s595 = scalar_lea.sflag [#allocation4], %s594
          %s596 = sand.u32 %s115, 1
          %s597 = smul.addr %s596, 8
          %s598 = scalar_lea.vmem [#allocation5], %s597
          %600 = dma.done %s595, 128
        $region68: #{tpu_custom_call.1} parent=63 // pred_fallthru
          _
        // Predicated region
        $region69: #{tpu_custom_call.1} parent=63 // pred_check
          %p601 = pneg %p156
        $region70: #{tpu_custom_call.1} parent=63 // pred_check_branch
          %603 = sbr.rel (%p601) target = $region72
        $region71: #{tpu_custom_call.1} parent=63 // pred_region
          %s604 = sand.u32 %s25, 1
          %s605 = scalar_lea.sflag [#allocation7], %s604
          %s606 = sand.u32 %s141, 1
          %s607 = scalar_lea.vmem [#allocation6], %s606
          %609 = dma.done %s605, 16
        $region72: #{tpu_custom_call.1} parent=63 // pred_fallthru
          _
        // Predicated region
        $region73: #{tpu_custom_call.1} parent=63 // pred_check
          %p610 = pneg %p182
        $region74: #{tpu_custom_call.1} parent=63 // pred_check_branch
          %612 = sbr.rel (%p610) target = $region76
        $region75: #{tpu_custom_call.1} parent=63 // pred_region
          %s613 = sand.u32 %s25, 1
          %s614 = scalar_lea.sflag [#allocation7], %s613
          %s615 = sand.u32 %s167, 1
          %s616 = scalar_lea.vmem [#allocation8], %s615
          %618 = dma.done %s614, 16
        $region76: #{tpu_custom_call.1} parent=63 // pred_fallthru
          _
      $region64: #{tpu_custom_call.1} parent=5 // pred_fallthru
        _
    $region6: #{tpu_custom_call.1} parent=1 // loop_footer
      %s23 = sadd.s32 1, %s19
    $region7: #{tpu_custom_call.1} parent=1 // loop_footer_branch
      %18 = sbr.rel target = $region3
    $region8: #{tpu_custom_call.1} parent=1 // loop_exit
      _
    %619 = vsyncpa [#allocation3], 1
    %s620 = scalar_lea.sflag [#allocation3], 1
    %621 = vsyncpa %s620, 1
    %622 = vsyncpa [#allocation4], 1
    %s623 = scalar_lea.sflag [#allocation4], 1
    %624 = vsyncpa %s623, 1
    %625 = vsyncpa [#allocation7], 1
    %s626 = scalar_lea.sflag [#allocation7], 1
    %627 = vsyncpa %s626, 1

</llo_original>
